<compile_context>
chip_gen: v5e
topology: v5e:2x2
jax: 0.10.0
libtpu: 0.0.40
codegen_flags: <defaults>
</compile_context>

<pallas_src>
import jax
import jax.numpy as jnp
import numpy as np
from jax.experimental import pallas as pl
from jax.experimental.pallas import tpu as pltpu


def _round_up(x, m):
    return ((x + m - 1) // m) * m


def _convt_kernel(first_ref, x_ref, w1_ref, w2_ref, b_ref, out_ref, carry_ref):
    """One (batch, L-tile) grid step.

    first_ref: (1, Cin, 1)   seed frame for prev at l==0 of this batch row
    x_ref:     (1, Cin, TL)  current activation tile (native NCW layout)
    w1_ref:    (Np, Cin)     w1[s*Cout+co, ci] = weight[ci, co, s]
    w2_ref:    (Np, Cin)     w2[s*Cout+co, ci] = weight[ci, co, s+stride]
    b_ref:     (Np, 1)       bias tiled over s (f32)
    out_ref:   (1, Np, TL)   out[s*Cout+co, l] for this tile
    carry_ref: (Cin, 1)      VMEM scratch: last frame of the previous tile
    """
    j = pl.program_id(1)

    cur = x_ref[0]                                     # (Cin, TL)

    # Re-seed the carried "previous frame" at the start of every batch row
    # (zeros for cache=False, left_pad buffer for cache=True).
    @pl.when(j == 0)
    def _():
        carry_ref[...] = first_ref[0]

    # prev[:, l] = cur[:, l-1]; column 0 comes from the carry (XLU lane roll,
    # no second HBM stream for the shifted activations).
    rolled = pltpu.roll(cur, 1, 1)                     # rolled[:, l] = cur[:, l-1]
    lane = jax.lax.broadcasted_iota(jnp.int32, cur.shape, 1)
    prev = jnp.where(lane == 0, carry_ref[...], rolled)

    acc = jnp.dot(w1_ref[...], cur, preferred_element_type=jnp.float32)
    acc = acc + jnp.dot(w2_ref[...], prev, preferred_element_type=jnp.float32)
    out_ref[0] = (acc + b_ref[...]).astype(out_ref.dtype)

    # Carry the last frame of this tile into the next grid step (same batch row).
    carry_ref[...] = cur[:, -1:]


def cached_conv_transpose1d(x, weight, bias, stride, cache=False, left_pad=None,
                            block_l=512, vmem_limit_bytes=32 * 1024 * 1024):
    """Forward of CachedConvTranspose1d.

    x:      (B, Cin, L)
    weight: (Cin, Cout, K) with K == 2*stride (ConvTranspose1d layout)
    bias:   (Cout,)
    Returns (B, Cout, L*stride)                       if cache=False
            ((B, Cout, L*stride), new_left_pad)       if cache=True
    """
    B, Cin, L = x.shape
    Cin_w, Cout, K = weight.shape
    assert Cin == Cin_w and K == 2 * stride, "WESH"

    compute_dtype = jnp.promote_types(x.dtype, weight.dtype)
    bytes_el = jnp.dtype(compute_dtype).itemsize

    N = stride * Cout
    Np = _round_up(N, 8)                     # sublane-aligned output rows

    # ---- L tile: multiple of 128 (lane-dense loads/stores), sized for VMEM ----
    TL = _round_up(min(block_l, max(L, 1)), 128)

    def working_set(tl):
        return (2 * _round_up(Cin, 8) * tl * bytes_el      # 2x buffered x tile
                + 2 * Np * tl * 4                          # 2x buffered out tile
                + 2 * Np * 128 * bytes_el)                 # resident weights

    while TL > 128 and working_set(TL) > vmem_limit_bytes // 2:
        TL = _round_up(TL // 2, 128)
    L_pad = _round_up(L, TL)

    # ---- operands: x stays NCW (no input transpose) ----
    x_p = x.astype(compute_dtype)
    if L_pad != L:
        x_p = jnp.pad(x_p, ((0, 0), (0, 0), (0, L_pad - L)))

    if cache:
        # PyTorch buffer left_pad is (1, Cin, 1); the torch.cat is only legal for B==1.
        assert left_pad is not None and B == 1 and left_pad.shape == (1, Cin, 1)
        first = left_pad.astype(compute_dtype)
        new_left_pad = x[..., -1:]
    else:
        first = jnp.zeros((B, Cin, 1), compute_dtype)
        new_left_pad = None

    # w1[s*Cout+co, ci] = w[ci,co,s];  w2[s*Cout+co, ci] = w[ci,co,s+stride]
    w1 = jnp.transpose(weight[:, :, :stride], (2, 1, 0)).reshape(N, Cin)
    w2 = jnp.transpose(weight[:, :, stride:], (2, 1, 0)).reshape(N, Cin)
    b_col = jnp.tile(bias, (stride,)).reshape(N, 1).astype(jnp.float32)
    if Np != N:
        w1 = jnp.pad(w1, ((0, Np - N), (0, 0)))
        w2 = jnp.pad(w2, ((0, Np - N), (0, 0)))
        b_col = jnp.pad(b_col, ((0, Np - N), (0, 0)))
    w1 = w1.astype(compute_dtype)
    w2 = w2.astype(compute_dtype)

    grid = (B, L_pad // TL)
    flops = 2 * 2 * B * L_pad * Np * Cin
    bytes_accessed = (B * Cin * L_pad * bytes_el + B * Np * L_pad * 4
                      + 2 * Np * Cin * bytes_el + Np * 4)

    out_k = pl.pallas_call(
        _convt_kernel,
        out_shape=jax.ShapeDtypeStruct((B, Np, L_pad), jnp.float32),
        grid=grid,
        in_specs=[
            pl.BlockSpec((1, Cin, 1), lambda b, j: (b, 0, 0)),    # prev seed
            pl.BlockSpec((1, Cin, TL), lambda b, j: (b, 0, j)),   # x tile (streamed)
            pl.BlockSpec((Np, Cin), lambda b, j: (0, 0)),         # w1 (resident)
            pl.BlockSpec((Np, Cin), lambda b, j: (0, 0)),         # w2 (resident)
            pl.BlockSpec((Np, 1), lambda b, j: (0, 0)),           # bias (resident)
        ],
        out_specs=pl.BlockSpec((1, Np, TL), lambda b, j: (b, 0, j)),
        scratch_shapes=[pltpu.VMEM((Cin, 1), compute_dtype)],
        compiler_params=pltpu.CompilerParams(
            dimension_semantics=("parallel", "arbitrary"),
            vmem_limit_bytes=vmem_limit_bytes),
        cost_estimate=pl.CostEstimate(
            flops=flops, transcendentals=0, bytes_accessed=bytes_accessed),
    )(first, x_p, w1, w2, b_col)

    # (B, Np, L_pad) -> crop pads -> (B, stride, Cout, L) -> (B, Cout, L, stride)
    # -> (B, Cout, L*stride).  The last reshape is free; the transpose is the one
    # remaining XLA layout op needed for the NCW API contract.
    out = out_k[:, :N, :L].reshape(B, stride, Cout, L)
    out = jnp.transpose(out, (0, 2, 3, 1)).reshape(B, Cout, L * stride)

    if cache:
        return out, new_left_pad
    return out


def _reference(x, weight, bias, stride, cache=False, left_pad=None):
    """Pure-JAX reference: ConvTranspose1d(padding=0) + the module's crop."""
    if cache:
        x = jnp.concatenate([left_pad, x], axis=-1)
    B, Cin, L = x.shape
    _, Cout, K = weight.shape
    T = (L - 1) * stride + K
    out = jnp.zeros((B, Cout, T), jnp.float32)
    for k in range(K):
        contrib = jnp.einsum('bil,io->bol', x, weight[:, :, k])
        out = out.at[:, :, k:k + (L - 1) * stride + 1:stride].add(contrib)
    out = out + bias[None, :, None]
    if cache:
        return out[:, :, stride:-stride]
    return out[:, :, :-stride]


if __name__ == "__main__":
    key = jax.random.PRNGKey(0)
    k1, k2, k3, k4, k5 = jax.random.split(key, 5)

    B, in_chan, out_chan, stride = 2, 4, 6, 4
    kernel = 2 * stride
    weight = jax.random.normal(k2, (in_chan, out_chan, kernel), jnp.float32) * 0.1
    bias = jax.random.normal(k3, (out_chan,), jnp.float32) * 0.1

    # Tolerance note: MXU f32 matmuls at default precision can carry ~1e-3-level
    # error vs the einsum reference; 5e-3 still catches any layout/shift mistake.
    TOL = dict(rtol=5e-3, atol=5e-3)

    # --- cache=False, small L (single L-tile) ---
    L = 16
    x = jax.random.normal(k1, (B, in_chan, L), jnp.float32)
    y = jax.block_until_ready(cached_conv_transpose1d(x, weight, bias, stride))
    assert y.shape == (B, out_chan, L * stride), y.shape
    np.testing.assert_allclose(np.asarray(y),
                               np.asarray(_reference(x, weight, bias, stride)), **TOL)

    # --- cache=False, longer L with small tiles -> exercises the carried prev ---
    L2 = 256
    x2 = jax.random.normal(k4, (B, in_chan, L2), jnp.float32)
    y2 = jax.block_until_ready(
        cached_conv_transpose1d(x2, weight, bias, stride, block_l=128))
    np.testing.assert_allclose(np.asarray(y2),
                               np.asarray(_reference(x2, weight, bias, stride)), **TOL)

    # --- cache=True (buffer-based streaming path, B must be 1) ---
    xc = jax.random.normal(k5, (1, in_chan, L), jnp.float32)
    lp = jnp.full((1, in_chan, 1), 0.5, jnp.float32)
    yc, new_lp = cached_conv_transpose1d(xc, weight, bias, stride,
                                         cache=True, left_pad=lp)
    yc = jax.block_until_ready(yc)
    np.testing.assert_allclose(
        np.asarray(yc),
        np.asarray(_reference(xc, weight, bias, stride, cache=True, left_pad=lp)), **TOL)
    np.testing.assert_allclose(np.asarray(new_lp), np.asarray(xc[..., -1:]))

    print("KERNEL_OK")
</pallas_src>

<mosaic_0001>
module attributes {stable_mosaic.version = 11 : i64} {
  func.func @_convt_kernel(%arg0: i32, %arg1: i32, %arg2: memref<1x4x1xf32, #tpu.memory_space<vmem>>, %arg3: memref<1x4x128xf32, #tpu.memory_space<vmem>>, %arg4: memref<24x4xf32, #tpu.memory_space<vmem>>, %arg5: memref<24x4xf32, #tpu.memory_space<vmem>>, %arg6: memref<24x1xf32, #tpu.memory_space<vmem>>, %arg7: memref<1x24x128xf32, #tpu.memory_space<vmem>>, %arg8: memref<4x1xf32, #tpu.memory_space<vmem>>) attributes {dimension_semantics = [#tpu.dimension_semantics<parallel>, #tpu.dimension_semantics<arbitrary>], iteration_bounds = array<i64: 2, 1>, scalar_prefetch = 0 : i64, scratch_operands = 1 : i64, tpu.core_type = #tpu.core_type<tc>, window_params = [{transform_indices = @transform_0, window_bounds = array<i64: 1, 4, 1>}, {transform_indices = @transform_1, window_bounds = array<i64: 1, 4, 128>}, {pipeline_mode = #tpu.pipeline_mode<synchronous>, transform_indices = @transform_2, window_bounds = array<i64: 24, 4>}, {pipeline_mode = #tpu.pipeline_mode<synchronous>, transform_indices = @transform_3, window_bounds = array<i64: 24, 4>}, {pipeline_mode = #tpu.pipeline_mode<synchronous>, transform_indices = @transform_4, window_bounds = array<i64: 24, 1>}, {transform_indices = @transform_5, window_bounds = array<i64: 1, 24, 128>}]} {
    %c0 = arith.constant 0 : index
    %c0_0 = arith.constant 0 : index
    %c0_1 = arith.constant 0 : index
    %0 = vector.load %arg3[%c0, %c0_0, %c0_1] : memref<1x4x128xf32, #tpu.memory_space<vmem>>, vector<1x4x128xf32>
    %1 = vector.shape_cast %0 : vector<1x4x128xf32> to vector<4x128xf32>
    %c0_i32 = arith.constant 0 : i32
    %2 = arith.cmpi eq, %arg1, %c0_i32 : i32
    %3 = arith.extui %2 : i1 to i32
    %c0_i32_2 = arith.constant 0 : i32
    %4 = arith.cmpi ne, %3, %c0_i32_2 : i32
    scf.if %4 {
      %c0_18 = arith.constant 0 : index
      %c0_19 = arith.constant 0 : index
      %c0_20 = arith.constant 0 : index
      %26 = vector.load %arg2[%c0_18, %c0_19, %c0_20] : memref<1x4x1xf32, #tpu.memory_space<vmem>>, vector<1x4x1xf32>
      %27 = vector.shape_cast %26 : vector<1x4x1xf32> to vector<4x1xf32>
      %c0_21 = arith.constant 0 : index
      %c0_22 = arith.constant 0 : index
      %28 = vector.load %arg8[%c0_21, %c0_22] : memref<4x1xf32, #tpu.memory_space<vmem>>, vector<4x1xf32>
      tpu.vector_store %arg8[%c0_21, %c0_22], %27 {strides = array<i32>} : memref<4x1xf32, #tpu.memory_space<vmem>>, vector<4x1xf32>,
    } else {
    }
    %c1_i32 = arith.constant 1 : i32
    %5 = tpu.dynamic_rotate %1 by %c1_i32 dim 1 : vector<4x128xf32>, i32 -> vector<4x128xf32>
    %6 = tpu.iota {dimensions = array<i32: 1>} : vector<4x128xi32>
    %c0_i32_3 = arith.constant 0 : i32
    %7 = vector.broadcast %c0_i32_3 : i32 to vector<4x128xi32>
    %8 = arith.cmpi eq, %6, %7 : vector<4x128xi32>
    %c0_4 = arith.constant 0 : index
    %c0_5 = arith.constant 0 : index
    %9 = vector.load %arg8[%c0_4, %c0_5] : memref<4x1xf32, #tpu.memory_space<vmem>>, vector<4x1xf32>
    %10 = vector.shape_cast %9 : vector<4x1xf32> to vector<4x1xf32>
    %11 = vector.broadcast %10 : vector<4x1xf32> to vector<4x128xf32>
    %12 = arith.select %8, %11, %5 : vector<4x128xi1>, vector<4x128xf32>
    %c0_6 = arith.constant 0 : index
    %c0_7 = arith.constant 0 : index
    %13 = vector.load %arg4[%c0_6, %c0_7] : memref<24x4xf32, #tpu.memory_space<vmem>>, vector<24x4xf32>
    %cst = arith.constant dense<0.000000e+00> : vector<24x128xf32>
    %14 = tpu.matmul %13, %1, %cst {dimension_numbers = #tpu.dot_dimension_numbers<[1], [0], [0], [1], [0, 0, 1, 1], [], []>} : vector<24x4xf32>, vector<4x128xf32>, vector<24x128xf32> -> vector<24x128xf32>
    %c0_8 = arith.constant 0 : index
    %c0_9 = arith.constant 0 : index
    %15 = vector.load %arg5[%c0_8, %c0_9] : memref<24x4xf32, #tpu.memory_space<vmem>>, vector<24x4xf32>
    %cst_10 = arith.constant dense<0.000000e+00> : vector<24x128xf32>
    %16 = tpu.matmul %15, %12, %cst_10 {dimension_numbers = #tpu.dot_dimension_numbers<[1], [0], [0], [1], [0, 0, 1, 1], [], []>} : vector<24x4xf32>, vector<4x128xf32>, vector<24x128xf32> -> vector<24x128xf32>
    %17 = arith.addf %14, %16 : vector<24x128xf32>
    %c0_11 = arith.constant 0 : index
    %c0_12 = arith.constant 0 : index
    %18 = vector.load %arg6[%c0_11, %c0_12] : memref<24x1xf32, #tpu.memory_space<vmem>>, vector<24x1xf32>
    %19 = vector.broadcast %18 : vector<24x1xf32> to vector<24x128xf32>
    %20 = arith.addf %17, %19 : vector<24x128xf32>
    %c0_13 = arith.constant 0 : index
    %c0_14 = arith.constant 0 : index
    %c0_15 = arith.constant 0 : index
    %21 = vector.load %arg7[%c0_13, %c0_14, %c0_15] : memref<1x24x128xf32, #tpu.memory_space<vmem>>, vector<1x24x128xf32>
    %22 = vector.shape_cast %21 : vector<1x24x128xf32> to vector<24x128xf32>
    %23 = vector.shape_cast %20 : vector<24x128xf32> to vector<1x24x128xf32>
    tpu.vector_store %arg7[%c0_13, %c0_14, %c0_15], %23 {strides = array<i32>} : memref<1x24x128xf32, #tpu.memory_space<vmem>>, vector<1x24x128xf32>,
    %24 = vector.extract_strided_slice %1 {offsets = [0, 127], sizes = [4, 1], strides = [1, 1]} : vector<4x128xf32> to vector<4x1xf32>
    %c0_16 = arith.constant 0 : index
    %c0_17 = arith.constant 0 : index
    %25 = vector.load %arg8[%c0_16, %c0_17] : memref<4x1xf32, #tpu.memory_space<vmem>>, vector<4x1xf32>
    tpu.vector_store %arg8[%c0_16, %c0_17], %24 {strides = array<i32>} : memref<4x1xf32, #tpu.memory_space<vmem>>, vector<4x1xf32>,
    return
  }
  func.func @transform_0(%arg0: i32, %arg1: i32) -> (i32, i32, i32) {
    %c0_i32 = arith.constant 0 : i32
    %c0_i32_0 = arith.constant 0 : i32
    %c0_i32_1 = arith.constant 0 : i32
    return %arg0, %c0_i32, %c0_i32_0 : i32, i32, i32
  }
  func.func @transform_1(%arg0: i32, %arg1: i32) -> (i32, i32, i32) {
    %c0_i32 = arith.constant 0 : i32
    %c0_i32_0 = arith.constant 0 : i32
    return %arg0, %c0_i32, %arg1 : i32, i32, i32
  }
  func.func @transform_2(%arg0: i32, %arg1: i32) -> (i32, i32) {
    %c0_i32 = arith.constant 0 : i32
    %c0_i32_0 = arith.constant 0 : i32
    %c0_i32_1 = arith.constant 0 : i32
    return %c0_i32, %c0_i32_0 : i32, i32
  }
  func.func @transform_3(%arg0: i32, %arg1: i32) -> (i32, i32) {
    %c0_i32 = arith.constant 0 : i32
    %c0_i32_0 = arith.constant 0 : i32
    %c0_i32_1 = arith.constant 0 : i32
    return %c0_i32, %c0_i32_0 : i32, i32
  }
  func.func @transform_4(%arg0: i32, %arg1: i32) -> (i32, i32) {
    %c0_i32 = arith.constant 0 : i32
    %c0_i32_0 = arith.constant 0 : i32
    %c0_i32_1 = arith.constant 0 : i32
    return %c0_i32, %c0_i32_0 : i32, i32
  }
  func.func @transform_5(%arg0: i32, %arg1: i32) -> (i32, i32, i32) {
    %c0_i32 = arith.constant 0 : i32
    %c0_i32_0 = arith.constant 0 : i32
    return %arg0, %c0_i32, %arg1 : i32, i32, i32
  }
}

</mosaic_0001>

<llo_original>
// kernel: tpu_custom_call.1
$region0: #{tpu_custom_call.1}
  #allocation0 [shape = 'u32[]', space=smem, size = 0x4, offset = 0x4, fixed_abs, tag = 'smem constant byte address 0x4 - core index']
  #allocation1 [shape = 'u32[72,128]{1,0:T(1,128)}', space=vmem, size = 0x9000, scoped, tag = 'internal scratch']
  #allocation2 [shape = 'f32[4,1]{1,0:T(4,128)}', space=vmem, size = 0x800, scoped, tag = 'scratch operand']
  %s0 = inlined_call_operand.vmem [shape: f32[2,4,1], index: 0, kind: input, shape index: {}]
  %s1 = inlined_call_operand.vmem [shape: f32[2,4,128], index: 1, kind: input, shape index: {}]
  %s2 = inlined_call_operand.vmem [shape: f32[24,4], index: 2, kind: input, shape index: {}]
  %s3 = inlined_call_operand.vmem [shape: f32[24,4], index: 3, kind: input, shape index: {}]
  %s4 = inlined_call_operand.vmem [shape: f32[24,1], index: 4, kind: input, shape index: {}]
  %s5 = inlined_call_operand.hbm [shape: f32[2,24,128], index: 5, kind: output, shape index: {}]
  %s6 = sld [smem:[#allocation0]]
  $region57: #{tpu_custom_call.1} parent=0
    _
  %s8 = ssub.s32 1, %s6
  %s9 = scalar_select 0, %s8, %s6
  $region1: #{tpu_custom_call.1} parent=0
    #allocation3 [shape = 'u8[24576]{0}', space=vmem, size = 0x6000, scoped, tag = 'output window, operand 0']
    #allocation4 [shape = 's32[2]{0}', space=sflag, size = 0x8, scoped, tag = 'scoped memory for tpu_custom_call.1']
    %10 = vsyncpa [#allocation4], 0
    %s11 = scalar_lea.sflag [#allocation4], 1
    %12 = vsyncpa %s11, 0
    loop: start=0, step=1, limit=4
    $region2: #{tpu_custom_call.1} parent=1 // loop_pre_header
      _
    $region3: #{tpu_custom_call.1} parent=1 // loop_header
      %s14 = sphi 0, %s18
      %p15 = scmp.ge.s32.totalorder %s14, 4
      %s21 = sphi 0, %s33
      %s22 = sphi 0, %s29
      %s23 = sphi 0, %s21
      %s24 = sphi 0, %s22
      %s25 = sphi 0, %s23
      %s26 = sphi 0, %s24
      %s36 = sphi 0, %s38
      %s39 = sphi 0, %s36
      %s40 = sphi 0, %s39
      %s56 = sphi 0, %s40
      %s64 = sphi 0, %s66
      %s67 = sphi 0, %s64
      %s68 = sphi 0, %s67
      %s84 = sphi 0, %s68
      %s88 = sphi 0, %s88
      %s90 = sphi 0, %s88
      %s91 = sphi 0, %s90
      %s105 = sphi 0, %s91
      %s109 = sphi 0, %s109
      %s111 = sphi 0, %s109
      %s112 = sphi 0, %s111
      %s126 = sphi 0, %s112
      %s130 = sphi 0, %s130
      %s132 = sphi 0, %s130
      %s133 = sphi 0, %s132
      %s147 = sphi 0, %s133
      %s155 = sphi 0, %s157
      %s158 = sphi 0, %s155
      %s159 = sphi 0, %s158
      %s175 = sphi 0, %s159
    $region4: #{tpu_custom_call.1} parent=1 // loop_header_branch
      %17 = sbr.rel (%p15) target = $region8
    $region5: #{tpu_custom_call.1} parent=1 // loop_body
      %s19 = ssub.s32 %s14, 1
      %s20 = ssub.s32 %s14, 2
      %s27 = sadd.s32 1, %s22
      %p28 = scmp.ge.s32.totalorder %s27, 1
      %s29 = scalar_select %p28, 0, %s27
      %s30 = sadd.s32 1, %s21
      %s31 = scalar_select %p28, %s30, %s21
      %p32 = scmp.ge.s32.totalorder %s31, 2
      %s33 = scalar_select %p32, 0, %s31
      %s34 = ssub.s32 %s21, %s33
      %p35 = scmp.eq.s32.totalorder %s34, 0
      %s37 = sadd.s32 %s36, 1
      %s38 = scalar_select %p35, %s36, %s37
      %p41 = pneg %p35
      %p42 = scmp.eq.s32.totalorder %s14, 1
      %p43 = por %p41, %p42
      %p44 = scmp.ne.s32.totalorder %s36, %s39
      %p45 = scmp.eq.s32.totalorder %s14, 0
      %p46 = por %p44, %p45
      %p47 = scmp.ne.s32.totalorder %s36, %s39
      %p48 = scmp.eq.s32.totalorder %s19, 1
      %p49 = por %p47, %p48
      %p50 = scmp.ne.s32.totalorder %s39, %s40
      %p51 = scmp.eq.s32.totalorder %s19, 0
      %p52 = por %p50, %p51
      %p53 = scmp.ne.s32.totalorder %s39, %s40
      %p54 = scmp.eq.s32.totalorder %s20, 1
      %p55 = por %p53, %p54
      %p57 = scmp.ne.s32.totalorder %s40, %s56
      %p58 = scmp.eq.s32.totalorder %s20, 0
      %p59 = por %p57, %p58
      %s60 = ssub.s32 %s21, %s33
      %s61 = ssub.s32 %s22, %s29
      %s62 = sor.u32 %s60, %s61
      %p63 = scmp.eq.s32.totalorder %s62, 0
      %s65 = sadd.s32 %s64, 1
      %s66 = scalar_select %p63, %s64, %s65
      %p69 = pneg %p63
      %p70 = scmp.eq.s32.totalorder %s14, 1
      %p71 = por %p69, %p70
      %p72 = scmp.ne.s32.totalorder %s64, %s67
      %p73 = scmp.eq.s32.totalorder %s14, 0
      %p74 = por %p72, %p73
      %p75 = scmp.ne.s32.totalorder %s64, %s67
      %p76 = scmp.eq.s32.totalorder %s19, 1
      %p77 = por %p75, %p76
      %p78 = scmp.ne.s32.totalorder %s67, %s68
      %p79 = scmp.eq.s32.totalorder %s19, 0
      %p80 = por %p78, %p79
      %p81 = scmp.ne.s32.totalorder %s67, %s68
      %p82 = scmp.eq.s32.totalorder %s20, 1
      %p83 = por %p81, %p82
      %p85 = scmp.ne.s32.totalorder %s68, %s84
      %p86 = scmp.eq.s32.totalorder %s20, 0
      %p87 = por %p85, %p86
      %s89 = sadd.s32 %s88, 1
      %p92 = scmp.eq.s32.totalorder %s14, 1
      %p93 = scmp.ne.s32.totalorder %s88, %s90
      %p94 = scmp.eq.s32.totalorder %s14, 0
      %p95 = por %p93, %p94
      %p96 = scmp.ne.s32.totalorder %s88, %s90
      %p97 = scmp.eq.s32.totalorder %s19, 1
      %p98 = por %p96, %p97
      %p99 = scmp.ne.s32.totalorder %s90, %s91
      %p100 = scmp.eq.s32.totalorder %s19, 0
      %p101 = por %p99, %p100
      %p102 = scmp.ne.s32.totalorder %s90, %s91
      %p103 = scmp.eq.s32.totalorder %s20, 1
      %p104 = por %p102, %p103
      %p106 = scmp.ne.s32.totalorder %s91, %s105
      %p107 = scmp.eq.s32.totalorder %s20, 0
      %p108 = por %p106, %p107
      %s110 = sadd.s32 %s109, 1
      %p113 = scmp.eq.s32.totalorder %s14, 1
      %p114 = scmp.ne.s32.totalorder %s109, %s111
      %p115 = scmp.eq.s32.totalorder %s14, 0
      %p116 = por %p114, %p115
      %p117 = scmp.ne.s32.totalorder %s109, %s111
      %p118 = scmp.eq.s32.totalorder %s19, 1
      %p119 = por %p117, %p118
      %p120 = scmp.ne.s32.totalorder %s111, %s112
      %p121 = scmp.eq.s32.totalorder %s19, 0
      %p122 = por %p120, %p121
      %p123 = scmp.ne.s32.totalorder %s111, %s112
      %p124 = scmp.eq.s32.totalorder %s20, 1
      %p125 = por %p123, %p124
      %p127 = scmp.ne.s32.totalorder %s112, %s126
      %p128 = scmp.eq.s32.totalorder %s20, 0
      %p129 = por %p127, %p128
      %s131 = sadd.s32 %s130, 1
      %p134 = scmp.eq.s32.totalorder %s14, 1
      %p135 = scmp.ne.s32.totalorder %s130, %s132
      %p136 = scmp.eq.s32.totalorder %s14, 0
      %p137 = por %p135, %p136
      %p138 = scmp.ne.s32.totalorder %s130, %s132
      %p139 = scmp.eq.s32.totalorder %s19, 1
      %p140 = por %p138, %p139
      %p141 = scmp.ne.s32.totalorder %s132, %s133
      %p142 = scmp.eq.s32.totalorder %s19, 0
      %p143 = por %p141, %p142
      %p144 = scmp.ne.s32.totalorder %s132, %s133
      %p145 = scmp.eq.s32.totalorder %s20, 1
      %p146 = por %p144, %p145
      %p148 = scmp.ne.s32.totalorder %s133, %s147
      %p149 = scmp.eq.s32.totalorder %s20, 0
      %p150 = por %p148, %p149
      %s151 = ssub.s32 %s21, %s33
      %s152 = ssub.s32 %s22, %s29
      %s153 = sor.u32 %s151, %s152
      %p154 = scmp.eq.s32.totalorder %s153, 0
      %s156 = sadd.s32 %s155, 1
      %s157 = scalar_select %p154, %s155, %s156
      %p160 = pneg %p154
      %p161 = scmp.eq.s32.totalorder %s14, 1
      %p162 = por %p160, %p161
      %p163 = scmp.ne.s32.totalorder %s155, %s158
      %p164 = scmp.eq.s32.totalorder %s14, 0
      %p165 = por %p163, %p164
      %p166 = scmp.ne.s32.totalorder %s155, %s158
      %p167 = scmp.eq.s32.totalorder %s19, 1
      %p168 = por %p166, %p167
      %p169 = scmp.ne.s32.totalorder %s158, %s159
      %p170 = scmp.eq.s32.totalorder %s19, 0
      %p171 = por %p169, %p170
      %p172 = scmp.ne.s32.totalorder %s158, %s159
      %p173 = scmp.eq.s32.totalorder %s20, 1
      %p174 = por %p172, %p173
      %p176 = scmp.ne.s32.totalorder %s159, %s175
      %p177 = scmp.eq.s32.totalorder %s20, 0
      %p178 = por %p176, %p177
      %p179 = scmp.le.s32.totalorder 1, %s14
      %p180 = scmp.lt.s32.totalorder %s14, 3
      %p181 = pnand %p179, %p180
      %p182 = pneg %p181
      // Predicated region
      $region9: #{tpu_custom_call.1} parent=5 // pred_check
        _
      $region10: #{tpu_custom_call.1} parent=5 // pred_check_branch
        %184 = sbr.rel (%p181) target = $region12
      $region11: #{tpu_custom_call.1} parent=5 // pred_region
        %s185 = ssub.s32 %s14, 1
        // Predicated region
        $region13: #{tpu_custom_call.1} parent=11 // pred_check
          %p186 = pneg %p101
        $region14: #{tpu_custom_call.1} parent=11 // pred_check_branch
          %188 = sbr.rel (%p186) target = $region16
        $region15: #{tpu_custom_call.1} parent=11 // pred_region
          _
        $region16: #{tpu_custom_call.1} parent=11 // pred_fallthru
          _
        // Predicated region
        $region17: #{tpu_custom_call.1} parent=11 // pred_check
          %p189 = pneg %p122
        $region18: #{tpu_custom_call.1} parent=11 // pred_check_branch
          %191 = sbr.rel (%p189) target = $region20
        $region19: #{tpu_custom_call.1} parent=11 // pred_region
          _
        $region20: #{tpu_custom_call.1} parent=11 // pred_fallthru
          _
        // Predicated region
        $region21: #{tpu_custom_call.1} parent=11 // pred_check
          %p192 = pneg %p143
        $region22: #{tpu_custom_call.1} parent=11 // pred_check_branch
          %194 = sbr.rel (%p192) target = $region24
        $region23: #{tpu_custom_call.1} parent=11 // pred_region
          _
        $region24: #{tpu_custom_call.1} parent=11 // pred_fallthru
          _
      $region12: #{tpu_custom_call.1} parent=5 // pred_fallthru
        _
      %p195 = scmp.lt.s32.totalorder %s14, 2
      // Predicated region
      $region25: #{tpu_custom_call.1} parent=5 // pred_check
        %p196 = pneg %p195
      $region26: #{tpu_custom_call.1} parent=5 // pred_check_branch
        %198 = sbr.rel (%p196) target = $region28
      $region27: #{tpu_custom_call.1} parent=5 // pred_region
        // Predicated region
        $region29: #{tpu_custom_call.1} parent=27 // pred_check
          %p199 = pneg %p46
        $region30: #{tpu_custom_call.1} parent=27 // pred_check_branch
          %201 = sbr.rel (%p199) target = $region32
        $region31: #{tpu_custom_call.1} parent=27 // pred_region
          %p202 = scmp.lt.s32.totalorder %s21, 1
          %s203 = scalar_select %p202, %s21, 1
          %s204 = smul.addr %s203, 4
          %s205 = scalar_lea.vmem %s0, %s204
        $region32: #{tpu_custom_call.1} parent=27 // pred_fallthru
          _
        // Predicated region
        $region33: #{tpu_custom_call.1} parent=27 // pred_check
          %p206 = pneg %p74
        $region34: #{tpu_custom_call.1} parent=27 // pred_check_branch
          %208 = sbr.rel (%p206) target = $region36
        $region35: #{tpu_custom_call.1} parent=27 // pred_region
          %p209 = scmp.lt.s32.totalorder %s21, 1
          %s210 = scalar_select %p209, %s21, 1
          %p211 = scmp.lt.s32.totalorder %s22, 0
          %s212 = scalar_select %p211, %s22, 0
          %s213 = sadd.s32 %s212, %s210
          %s214 = smul.addr %s213, 4
          %s215 = scalar_lea.vmem %s1, %s214
        $region36: #{tpu_custom_call.1} parent=27 // pred_fallthru
          _
      $region28: #{tpu_custom_call.1} parent=5 // pred_fallthru
        _
      %p216 = scmp.le.s32.totalorder 1, %s14
      %p217 = scmp.lt.s32.totalorder %s14, 3
      %p218 = pnand %p216, %p217
      %p219 = pneg %p218
      // Predicated region
      $region37: #{tpu_custom_call.1} parent=5 // pred_check
        _
      $region38: #{tpu_custom_call.1} parent=5 // pred_check_branch
        %221 = sbr.rel (%p218) target = $region40
      $region39: #{tpu_custom_call.1} parent=5 // pred_region
        %s222 = ssub.s32 %s14, 1
        %p223 = scmp.lt.s32.totalorder %s23, 1
        %s224 = scalar_select %p223, %s23, 1
        %s225 = smul.addr %s224, 4
        %s226 = scalar_lea.vmem %s0, %s225
        %p227 = pneg %p52
        %p228 = pneg %p49
        %p229 = scmp.lt.s32.totalorder %s23, 1
        %s230 = scalar_select %p229, %s23, 1
        %p231 = scmp.lt.s32.totalorder %s24, 0
        %s232 = scalar_select %p231, %s24, 0
        %s233 = sadd.s32 %s232, %s230
        %s234 = smul.addr %s233, 4
        %s235 = scalar_lea.vmem %s1, %s234
        %p236 = pneg %p80
        %p237 = pneg %p77
        %p238 = pneg %p101
        %p239 = pneg %p98
        %p240 = pneg %p122
        %p241 = pneg %p119
        %p242 = pneg %p143
        %p243 = pneg %p140
        %p244 = pneg %p171
        %p245 = pneg %p168
        %s246 = sand.u32 %s158, 1
        %s247 = scalar_lea.sflag [#allocation4], %s246
        %s248 = sand.u32 %s158, 1
        %s249 = smul.addr %s248, 24
        %s250 = scalar_lea.vmem [#allocation3], %s249
        %p251 = scmp.lt.s32.totalorder %s23, 1
        %s252 = scalar_select %p251, %s23, 1
        %s253 = smul.addr %s252, 4
        %s254 = scalar_lea.vmem %s0, %s253
        %p255 = scmp.lt.s32.totalorder %s23, 1
        %s256 = scalar_select %p255, %s23, 1
        %p257 = scmp.lt.s32.totalorder %s24, 0
        %s258 = scalar_select %p257, %s24, 0
        %s259 = sadd.s32 %s258, %s256
        %s260 = smul.addr %s259, 4
        %s261 = scalar_lea.vmem %s1, %s260
        %v262 = vld [vmem:[%s261] sm:$0xf]
        %p263 = scmp.eq.s32.totalorder %s24, 0
        // Predicated region
        $region41: #{tpu_custom_call.1} parent=39 // pred_check
          %p264 = pneg %p263
        $region42: #{tpu_custom_call.1} parent=39 // pred_check_branch
          %266 = sbr.rel (%p264) target = $region44
        $region43: #{tpu_custom_call.1} parent=39 // pred_region
          %v267 = vld [vmem:[%s254] sm:$0xf]
          %vm268 = vcmask 3072
          %269 = vst.msk [vmem:[#allocation2] sm:$0xf] %vm268, %v267
        $region44: #{tpu_custom_call.1} parent=39 // pred_fallthru
          _
        %270 = vrot.lane.b32.xlu0 %v262, 1
        %v271 = vpop.permute.xlu0 %270
        %v272 = vlaneseq
        %v273 = vand.u32 %v272, 127
        %vm274 = vcmp.eq.s32.totalorder %v273, 0
        %v275 = vld [vmem:[#allocation2] sm:$0xf]
        %277 = vset.pattern.permute.xlu0 0
        %278 = vperm.xlu0 %277, %v275
        %v279 = vpop.permute.xlu0 %278
        %v281 = vsel %vm274, %v279, %v271
        %v282 = vld [vmem:[%s2] sm:$0xff]
        %v283 = vld [vmem:[%s2 + $0x8] sm:$0xff]
        %v284 = vld [vmem:[%s2 + $0x10] sm:$0xff]
        %v285 = vld [vmem:[%s3] sm:$0xff]
        %v286 = vld [vmem:[%s3 + $0x8] sm:$0xff]
        %v287 = vld [vmem:[%s3 + $0x10] sm:$0xff]
        %vm288 = vcmask 31744
        %v290 = vsel %vm288, %v285, 0
        %v293 = vsel %vm288, %v286, 0
        %v296 = vsel %vm288, %v287, 0
        %vm298 = vcmask 1043456
        %v300 = vsel %vm298, %v281, 0
        %302 = vmatpush.msra.mxu0 0.0
        %303 = vmatpush.msra.mxu0 0.0
        %304 = vmatpush.msra.mxu0 0.0
        %305 = vmatpush.msra.mxu0 0.0
        %306 = vmatpush.msra.mxu0 0.0
        %307 = vmatpush.msra.mxu0 0.0
        %308 = vmatpush.msra.mxu0 0.0
        %309 = vmatpush.msra.mxu0 0.0
        %310 = vmatpush.msra.mxu0 0.0
        %311 = vmatpush.msra.mxu0 0.0
        %312 = vmatpush.msra.mxu0 0.0
        %313 = vmatpush.msra.mxu0 0.0
        %314 = vmatpush.msra.mxu0 0.0
        %315 = vmatpush.msra.mxu0 0.0
        %316 = vmatpush.msra.mxu0 0.0
        %317 = vmatpush.msra.mxu0 %v300
        %318 = vmatmul.f32.gmra.mxu0 %v290
        %v319 = vpop.f32.mrf.mxu0
        %v320 = vadd.f32 0.0, %v319
        %321 = vmatmul.f32.gmra.mxu0 %v293
        %v322 = vpop.f32.mrf.mxu0
        %v323 = vadd.f32 0.0, %v322
        %324 = vmatmul.f32.gmra.mxu0 %v296
        %v325 = vpop.f32.mrf.mxu0
        %v326 = vadd.f32 0.0, %v325
        %327 = vdwg.mxu0
        %v329 = vsel %vm288, %v282, 0
        %v332 = vsel %vm288, %v283, 0
        %v335 = vsel %vm288, %v284, 0
        %v338 = vsel %vm298, %v262, 0
        %340 = vmatpush.msra.mxu0 0.0
        %341 = vmatpush.msra.mxu0 0.0
        %342 = vmatpush.msra.mxu0 0.0
        %343 = vmatpush.msra.mxu0 0.0
        %344 = vmatpush.msra.mxu0 0.0
        %345 = vmatpush.msra.mxu0 0.0
        %346 = vmatpush.msra.mxu0 0.0
        %347 = vmatpush.msra.mxu0 0.0
        %348 = vmatpush.msra.mxu0 0.0
        %349 = vmatpush.msra.mxu0 0.0
        %350 = vmatpush.msra.mxu0 0.0
        %351 = vmatpush.msra.mxu0 0.0
        %352 = vmatpush.msra.mxu0 0.0
        %353 = vmatpush.msra.mxu0 0.0
        %354 = vmatpush.msra.mxu0 0.0
        %355 = vmatpush.msra.mxu0 %v338
        %356 = vmatmul.f32.gmra.mxu0 %v329
        %v357 = vpop.f32.mrf.mxu0
        %v358 = vadd.f32 %v320, %v357
        %359 = vmatmul.f32.gmra.mxu0 %v332
        %v360 = vpop.f32.mrf.mxu0
        %v361 = vadd.f32 %v323, %v360
        %362 = vmatmul.f32.gmra.mxu0 %v335
        %v363 = vpop.f32.mrf.mxu0
        %v364 = vadd.f32 %v326, %v363
        %365 = vdwg.mxu0
        %v366 = vld [vmem:[%s4] sm:$0xff]
        %v367 = vld [vmem:[%s4 + $0x8] sm:$0xff]
        %v368 = vld [vmem:[%s4 + $0x10] sm:$0xff]
        %370 = vset.pattern.permute.xlu0 0
        %371 = vperm.xlu0 %370, %v366
        %v372 = vpop.permute.xlu0 %371
        %375 = vset.pattern.permute.xlu0 0
        %376 = vperm.xlu0 %375, %v367
        %v377 = vpop.permute.xlu0 %376
        %380 = vset.pattern.permute.xlu0 0
        %381 = vperm.xlu0 %380, %v368
        %v382 = vpop.permute.xlu0 %381
        %v384 = vadd.f32 %v358, %v372
        %v385 = vadd.f32 %v361, %v377
        %v386 = vadd.f32 %v364, %v382
        %387 = vst [vmem:[%s250] sm:$0xff] %v384
        %388 = vst [vmem:[%s250 + $0x8] sm:$0xff] %v385
        %389 = vst [vmem:[%s250 + $0x10] sm:$0xff] %v386
        %390 = vrot.lane.b32.xlu0 %v262, 1
        %v391 = vpop.permute.xlu0 %390
        %vm393 = vcmask 3072
        %394 = vst.msk [vmem:[#allocation2] sm:$0xf] %vm393, %v391
        %s395 = sand.u32 %s158, 1
        %s396 = scalar_lea.sflag [#allocation4], %s395
        %s397 = sand.u32 %s158, 1
        %s398 = smul.addr %s397, 24
        %s399 = scalar_lea.vmem [#allocation3], %s398
        // Predicated region
        $region45: #{tpu_custom_call.1} parent=39 // pred_check
          %p400 = pneg %p168
        $region46: #{tpu_custom_call.1} parent=39 // pred_check_branch
          %402 = sbr.rel (%p400) target = $region48
        $region47: #{tpu_custom_call.1} parent=39 // pred_region
          %404 = vsyncadd %s396, 0
          %s405 = smul.addr %s23, 3
          %s406 = sadd.s32 %s24, %s405
          %s407 = smul.addr %s406, 8
          %s408 = scalar_lea.hbm %s5, %s407
          %s409 = sshll.u32 %s399, 4
          %s410 = int_to_ptr.vmem [resolvable:$true] %s409
          %s411 = sshll.u32 %s408, 4
          %s412 = int_to_ptr.hbm [resolvable:$true] %s411
          %417 = dma.vmem_to_hbm [thread:$0]  %s410, 384, %s412, %s396, 128, 128, 8
        $region48: #{tpu_custom_call.1} parent=39 // pred_fallthru
          _
      $region40: #{tpu_custom_call.1} parent=5 // pred_fallthru
        _
      %p418 = scmp.le.s32.totalorder 2, %s14
      // Predicated region
      $region49: #{tpu_custom_call.1} parent=5 // pred_check
        %p419 = pneg %p418
      $region50: #{tpu_custom_call.1} parent=5 // pred_check_branch
        %421 = sbr.rel (%p419) target = $region52
      $region51: #{tpu_custom_call.1} parent=5 // pred_region
        %s422 = ssub.s32 %s14, 2
        // Predicated region
        $region53: #{tpu_custom_call.1} parent=51 // pred_check
          %p423 = pneg %p174
        $region54: #{tpu_custom_call.1} parent=51 // pred_check_branch
          %425 = sbr.rel (%p423) target = $region56
        $region55: #{tpu_custom_call.1} parent=51 // pred_region
          %s426 = sand.u32 %s159, 1
          %s427 = scalar_lea.sflag [#allocation4], %s426
          %s428 = sand.u32 %s159, 1
          %s429 = smul.addr %s428, 24
          %s430 = scalar_lea.vmem [#allocation3], %s429
          %432 = dma.done %s427, 384
        $region56: #{tpu_custom_call.1} parent=51 // pred_fallthru
          _
      $region52: #{tpu_custom_call.1} parent=5 // pred_fallthru
        _
    $region6: #{tpu_custom_call.1} parent=1 // loop_footer
      %s18 = sadd.s32 1, %s14
    $region7: #{tpu_custom_call.1} parent=1 // loop_footer_branch
      %13 = sbr.rel target = $region3
    $region8: #{tpu_custom_call.1} parent=1 // loop_exit
      _
    %433 = vsyncpa [#allocation4], 1
    %s434 = scalar_lea.sflag [#allocation4], 1
    %435 = vsyncpa %s434, 1

</llo_original>
